<compile_context>
chip_gen: v7x
topology: tpu7x:2x2x1
jax: 0.10.0
libtpu: 0.0.40
codegen_flags: <defaults>
</compile_context>

<pallas_src>
import functools

import jax
import jax.numpy as jnp
from jax.experimental import pallas as pl
from jax.experimental.pallas import tpu as pltpu


def _round_up(a: int, b: int) -> int:
    return ((a + b - 1) // b) * b


def _pca_unproj_kernel(x_ref, wT_ref, b_ref, o_ref):
    # Full-K MXU matmul (K is small for PCA), f32 accumulation, bias broadcast.
    acc = jnp.dot(x_ref[...], wT_ref[...], preferred_element_type=jnp.float32)
    o_ref[...] = (acc + b_ref[...]).astype(o_ref.dtype)


@functools.partial(jax.jit, static_argnames=("tm", "tn", "out_dtype"))
def _pca_unproj_pallas(x, wT, bias, *, tm, tn, out_dtype):
    M, K = x.shape
    K2, N = wT.shape
    assert K == K2, (K, K2)
    out_dtype = jnp.dtype(out_dtype)

    # Clamp tiles to the (vreg-aligned) problem size; tiny problems collapse
    # to a single grid step with full-array blocks.  Sublane minimum depends
    # on the input dtype (f32: 8, bf16: 16, int8/fp8: 32).
    sublane = {4: 8, 2: 16, 1: 32}[jnp.dtype(x.dtype).itemsize]
    tm = min(tm, _round_up(M, sublane))
    tn = min(tn, _round_up(N, 128))

    # Double-buffered VMEM footprint for the chosen tiles, +25% headroom for
    # lane/sublane padding and compiler-internal scratch; small safety floor.
    in_bytes = jnp.dtype(x.dtype).itemsize
    tile_bytes = 2 * ((tm * K + K * tn + tn) * in_bytes
                      + tm * tn * out_dtype.itemsize)
    vmem_limit = int(max(tile_bytes + tile_bytes // 4, 8 * 1024 * 1024))

    # Weight-major grid: j (output columns) outer / "parallel", i (batch)
    # innermost / "arbitrary".  wT & bias blocks stay VMEM-resident across the
    # whole batch, and a v7x megacore split lands on the large N axis.
    grid = (pl.cdiv(N, tn), pl.cdiv(M, tm))

    return pl.pallas_call(
        _pca_unproj_kernel,
        out_shape=jax.ShapeDtypeStruct((M, N), out_dtype),
        grid_spec=pltpu.PrefetchScalarGridSpec(
            num_scalar_prefetch=0,
            grid=grid,
            in_specs=[
                pl.BlockSpec((tm, K), lambda j, i: (i, 0)),  # x: streamed per batch tile
                pl.BlockSpec((K, tn), lambda j, i: (0, j)),  # wT: resident across i
                pl.BlockSpec((1, tn), lambda j, i: (0, j)),  # bias: resident across i
            ],
            out_specs=pl.BlockSpec((tm, tn), lambda j, i: (i, j)),
        ),
        compiler_params=pltpu.CompilerParams(
            dimension_semantics=("parallel", "arbitrary"),
            vmem_limit_bytes=vmem_limit,
        ),
    )(x, wT, bias)


def make_pca_unprojection(compT, means, *, tm=512, tn=4096, out_dtype=None,
                          xla_fast_path_elems=1 << 20):
    """Build a PcaUnprojection callable: y = x @ compT.T + means.

    compT: (full_dim, n_components) float32   (F.linear weight)
    means: (full_dim,)              float32   (F.linear bias)

    The weight is transposed to (n_components, full_dim) ONCE here, so the
    per-call path pays no XLA transpose.  Outputs with fewer than
    `xla_fast_path_elems` elements fall back to a single fused XLA matmul+bias
    (kernel-launch glue would dominate at those sizes); pass 0 to always use
    the Pallas kernel.  `out_dtype` (e.g. jnp.bfloat16) halves the dominant
    HBM write traffic while keeping f32 accumulation in-kernel.
    """
    compT = jnp.asarray(compT, dtype=jnp.float32)
    means = jnp.asarray(means, dtype=jnp.float32)
    N, K = compT.shape
    assert means.shape == (N,), (means.shape, N)

    wT = jnp.asarray(compT.T)           # (K, N), materialized once at build time
    bias = means.reshape(1, N)          # (1, N) for lane-wise broadcast
    odt = jnp.dtype(out_dtype) if out_dtype is not None else None

    def unproject(x):
        M, Kx = x.shape
        assert Kx == K, (Kx, K)
        out_dt = odt if odt is not None else jnp.dtype(x.dtype)
        if M * N < xla_fast_path_elems:
            # Tiny-problem fast path: one fused XLA matmul + bias add.
            return (jnp.dot(x, wT, preferred_element_type=jnp.float32)
                    + bias).astype(out_dt)
        return _pca_unproj_pallas(x, wT, bias, tm=tm, tn=tn,
                                  out_dtype=out_dt.name)

    return unproject


def pca_unprojection(x, compT, means, **kwargs):
    """One-shot convenience wrapper.  Prefer make_pca_unprojection() for
    repeated calls: this pays the weight transpose on every call."""
    return make_pca_unprojection(compT, means, **kwargs)(x)


if __name__ == "__main__":
    key = jax.random.PRNGKey(0)
    kx, kw, kb = jax.random.split(key, 3)

    # Shapes consistent with the module: batch=16 frames of n_components=32
    # PCA coefficients unprojected to full_dim=256.  Fast path disabled so the
    # Pallas kernel itself is exercised (it collapses to one grid step here).
    M, K, N = 16, 32, 256
    x = jax.random.normal(kx, (M, K), dtype=jnp.float32)
    compT = jax.random.normal(kw, (N, K), dtype=jnp.float32) * 0.1  # (full_dim, n_comp)
    means = jax.random.normal(kb, (N,), dtype=jnp.float32)          # (full_dim,)

    unproject = make_pca_unprojection(compT, means, xla_fast_path_elems=0)
    y = jax.block_until_ready(unproject(x))
    y_ref = x @ compT.T + means
    assert y.shape == (M, N) and y.dtype == jnp.float32
    assert jnp.allclose(y, y_ref, atol=1e-5, rtol=1e-5), "mismatch vs reference"

    # Ragged shapes exercise the edge-clipping (no pad / no slice) path.
    M2, K2, N2 = 10, 32, 300
    x2 = jax.random.normal(kx, (M2, K2), dtype=jnp.float32)
    compT2 = jax.random.normal(kw, (N2, K2), dtype=jnp.float32) * 0.1
    means2 = jax.random.normal(kb, (N2,), dtype=jnp.float32)
    y2 = jax.block_until_ready(
        make_pca_unprojection(compT2, means2, xla_fast_path_elems=0)(x2))
    y2_ref = x2 @ compT2.T + means2
    assert y2.shape == (M2, N2)
    assert jnp.allclose(y2, y2_ref, atol=1e-5, rtol=1e-5), "ragged mismatch vs reference"

    # Small multi-tile case (forced small tiles) exercising the weight-resident
    # grid order and partial edge blocks across both grid axes.
    M3, K3, N3 = 48, 32, 640
    x3 = jax.random.normal(kx, (M3, K3), dtype=jnp.float32)
    compT3 = jax.random.normal(kw, (N3, K3), dtype=jnp.float32) * 0.1
    means3 = jax.random.normal(kb, (N3,), dtype=jnp.float32)
    un3 = make_pca_unprojection(compT3, means3, tm=16, tn=256,
                                xla_fast_path_elems=0)
    y3 = jax.block_until_ready(un3(x3))
    y3_ref = x3 @ compT3.T + means3
    assert y3.shape == (M3, N3)
    assert jnp.allclose(y3, y3_ref, atol=1e-4, rtol=1e-4), "multi-tile mismatch"

    print("KERNEL_OK")
</pallas_src>

<mosaic_0001>
module attributes {stable_mosaic.version = 11 : i64} {
  func.func @_pca_unproj_kernel(%arg0: i32, %arg1: i32, %arg2: memref<16x32xf32, #tpu.memory_space<vmem>>, %arg3: memref<32x256xf32, #tpu.memory_space<vmem>>, %arg4: memref<1x256xf32, #tpu.memory_space<vmem>>, %arg5: memref<16x256xf32, #tpu.memory_space<vmem>>) attributes {dimension_semantics = [#tpu.dimension_semantics<parallel>, #tpu.dimension_semantics<arbitrary>], iteration_bounds = array<i64: 1, 1>, scalar_prefetch = 0 : i64, scratch_operands = 0 : i64, tpu.core_type = #tpu.core_type<tc>, window_params = [{transform_indices = @transform_0, window_bounds = array<i64: 16, 32>}, {transform_indices = @transform_1, window_bounds = array<i64: 32, 256>}, {transform_indices = @transform_2, window_bounds = array<i64: 1, 256>}, {transform_indices = @transform_3, window_bounds = array<i64: 16, 256>}]} {
    %c0 = arith.constant 0 : index
    %c0_0 = arith.constant 0 : index
    %0 = vector.load %arg2[%c0, %c0_0] : memref<16x32xf32, #tpu.memory_space<vmem>>, vector<16x32xf32>
    %c0_1 = arith.constant 0 : index
    %c0_2 = arith.constant 0 : index
    %1 = vector.load %arg3[%c0_1, %c0_2] : memref<32x256xf32, #tpu.memory_space<vmem>>, vector<32x256xf32>
    %cst = arith.constant dense<0.000000e+00> : vector<16x256xf32>
    %2 = tpu.matmul %0, %1, %cst {dimension_numbers = #tpu.dot_dimension_numbers<[1], [0], [0], [1], [0, 0, 1, 1], [], []>} : vector<16x32xf32>, vector<32x256xf32>, vector<16x256xf32> -> vector<16x256xf32>
    %c0_3 = arith.constant 0 : index
    %c0_4 = arith.constant 0 : index
    %3 = vector.load %arg4[%c0_3, %c0_4] : memref<1x256xf32, #tpu.memory_space<vmem>>, vector<1x256xf32>
    %4 = vector.broadcast %3 : vector<1x256xf32> to vector<16x256xf32>
    %5 = arith.addf %2, %4 : vector<16x256xf32>
    %c0_5 = arith.constant 0 : index
    %c0_6 = arith.constant 0 : index
    %6 = vector.load %arg5[%c0_5, %c0_6] : memref<16x256xf32, #tpu.memory_space<vmem>>, vector<16x256xf32>
    tpu.vector_store %arg5[%c0_5, %c0_6], %5 {strides = array<i32>} : memref<16x256xf32, #tpu.memory_space<vmem>>, vector<16x256xf32>,
    return
  }
  func.func @transform_0(%arg0: i32, %arg1: i32) -> (i32, i32) {
    %c0_i32 = arith.constant 0 : i32
    %c0_i32_0 = arith.constant 0 : i32
    return %arg1, %c0_i32 : i32, i32
  }
  func.func @transform_1(%arg0: i32, %arg1: i32) -> (i32, i32) {
    %c0_i32 = arith.constant 0 : i32
    %c0_i32_0 = arith.constant 0 : i32
    return %c0_i32, %arg0 : i32, i32
  }
  func.func @transform_2(%arg0: i32, %arg1: i32) -> (i32, i32) {
    %c0_i32 = arith.constant 0 : i32
    %c0_i32_0 = arith.constant 0 : i32
    return %c0_i32, %arg0 : i32, i32
  }
  func.func @transform_3(%arg0: i32, %arg1: i32) -> (i32, i32) {
    %c0_i32 = arith.constant 0 : i32
    return %arg1, %arg0 : i32, i32
  }
}

</mosaic_0001>

<llo_original>
// kernel: _pca_unproj_pallas.1
$region0: #{_pca_unproj_pallas.1}
  #allocation0 [shape = 'u32[]', space=smem, size = 0x4, offset = 0x4, fixed_abs, tag = 'smem constant byte address 0x4 - core index']
  #allocation1 [shape = 'u32[144,128]{1,0:T(1,128)}', space=vmem, size = 0x12000, scoped, tag = 'internal scratch']
  %s0 = inlined_call_operand.hbm [shape: f32[16,32], index: 0, kind: input, shape index: {}]
  %s1 = inlined_call_operand.hbm [shape: f32[32,256], index: 1, kind: input, shape index: {}]
  %s2 = inlined_call_operand.vmem [shape: f32[1,256], index: 2, kind: input, shape index: {}]
  %s3 = inlined_call_operand.hbm [shape: f32[16,256], index: 3, kind: output, shape index: {}]
  %s4 = sld [smem:[#allocation0]]
  $region30: #{_pca_unproj_pallas.1} parent=0
    _
  %s6 = ssub.s32 1, %s4
  %s7 = scalar_select 0, %s6, %s4
  $region1: #{_pca_unproj_pallas.1} parent=0
    #allocation2 [shape = 'u8[8192]{0}', space=vmem, size = 0x2000, scoped, tag = 'input window, operand 0, single buffered']
    #allocation3 [shape = 's32[1]{0}', space=sflag, size = 0x4, scoped, tag = 'scoped memory for _pca_unproj_pallas.1']
    #allocation4 [shape = 's32[1]{0}', space=sflag, size = 0x4, scoped, tag = 'scoped memory for _pca_unproj_pallas.1']
    #allocation5 [shape = 'u8[32768]{0}', space=vmem, size = 0x8000, scoped, tag = 'input window, operand 1, single buffered']
    #allocation6 [shape = 's32[1]{0}', space=sflag, size = 0x4, scoped, tag = 'scoped memory for _pca_unproj_pallas.1']
    #allocation7 [shape = 'u8[16384]{0}', space=vmem, size = 0x4000, scoped, tag = 'output window, operand 0, single buffered']
    %8 = vsyncpa [#allocation3], 0
    %9 = vsyncpa [#allocation6], 0
    %10 = vsyncpa [#allocation4], 0
    // Predicated region
    $region2: #{_pca_unproj_pallas.1} parent=1 // pred_check
      _
    $region3: #{_pca_unproj_pallas.1} parent=1 // pred_check_branch
      %12 = sbr.rel (0) target = $region5
    $region4: #{_pca_unproj_pallas.1} parent=1 // pred_region
      %s14 = ssub.s32 256, 256
      %15 = vsyncadd [#allocation3], %s14
      %s16 = sshll.u32 [#allocation2], 4
      %s17 = int_to_ptr.vmem [resolvable:$true] %s16
      %22 = dma.hbm_to_vmem [thread:$0]  %s0, 256, %s17, [#allocation3], 128, 128, 8
    $region5: #{_pca_unproj_pallas.1} parent=1 // pred_fallthru
      _
    // Predicated region
    $region6: #{_pca_unproj_pallas.1} parent=1 // pred_check
      _
    $region7: #{_pca_unproj_pallas.1} parent=1 // pred_check_branch
      %24 = sbr.rel (0) target = $region9
    $region8: #{_pca_unproj_pallas.1} parent=1 // pred_region
      %s26 = ssub.s32 1024, 1024
      %27 = vsyncadd [#allocation6], %s26
      %s28 = sshll.u32 [#allocation5], 4
      %s29 = int_to_ptr.vmem [resolvable:$true] %s28
      %34 = dma.hbm_to_vmem [thread:$0]  %s1, 1024, %s29, [#allocation6], 256, 256, 16
    $region9: #{_pca_unproj_pallas.1} parent=1 // pred_fallthru
      _
    // Predicated region
    $region10: #{_pca_unproj_pallas.1} parent=1 // pred_check
      _
    $region11: #{_pca_unproj_pallas.1} parent=1 // pred_check_branch
      %36 = sbr.rel (0) target = $region13
    $region12: #{_pca_unproj_pallas.1} parent=1 // pred_region
      _
    $region13: #{_pca_unproj_pallas.1} parent=1 // pred_fallthru
      _
    // Predicated region
    $region14: #{_pca_unproj_pallas.1} parent=1 // pred_check
      _
    $region15: #{_pca_unproj_pallas.1} parent=1 // pred_check_branch
      %38 = sbr.rel (0) target = $region17
    $region16: #{_pca_unproj_pallas.1} parent=1 // pred_region
      %39 = dma.done [#allocation3], 256
    $region17: #{_pca_unproj_pallas.1} parent=1 // pred_fallthru
      _
    // Predicated region
    $region18: #{_pca_unproj_pallas.1} parent=1 // pred_check
      _
    $region19: #{_pca_unproj_pallas.1} parent=1 // pred_check_branch
      %41 = sbr.rel (0) target = $region21
    $region20: #{_pca_unproj_pallas.1} parent=1 // pred_region
      %42 = dma.done [#allocation6], 1024
    $region21: #{_pca_unproj_pallas.1} parent=1 // pred_fallthru
      _
    %v43 = vld [vmem:[#allocation2] sm:$0xff]
    %v44 = vld [vmem:[#allocation2 + $0x8] sm:$0xff]
    %v45 = vld [vmem:[#allocation5] sm:$0xff]
    %v46 = vld [vmem:[#allocation5 + $0x8] sm:$0xff]
    %v47 = vld [vmem:[#allocation5 + $0x10] sm:$0xff]
    %v48 = vld [vmem:[#allocation5 + $0x18] sm:$0xff]
    %v49 = vld [vmem:[#allocation5 + $0x20] sm:$0xff]
    %v50 = vld [vmem:[#allocation5 + $0x28] sm:$0xff]
    %v51 = vld [vmem:[#allocation5 + $0x30] sm:$0xff]
    %v52 = vld [vmem:[#allocation5 + $0x38] sm:$0xff]
    %v53 = vld [vmem:[%s2] sm:$0x3]
    %v55 = vlaneseq
    %v56 = vshrl.u32 %v55, 7
    %v57 = vsub.s32 0, %v56
    %v58 = vrot.slane %v53, %v57
    %v59 = vlaneseq
    %v60 = vshrl.u32 %v59, 7
    %v61 = vsub.s32 1, %v60
    %v62 = vrot.slane %v53, %v61
    %vm65 = vcmask 261120
    %v67 = vsel %vm65, %v43, 0
    %v70 = vsel %vm65, %v44, 0
    %72 = vmatprep.subr.mxu0 %v46
    %73 = vmatpush1.msra.mxu0 %v45
    %74 = vmatprep.subr.mxu0 %v48
    %75 = vmatpush1.msra.mxu0 %v47
    %76 = vmatprep.subr.mxu0 %v50
    %77 = vmatpush1.msra.mxu0 %v49
    %78 = vmatprep.subr.mxu0 %v52
    %79 = vmatpush1.msra.mxu0 %v51
    %80 = vmatprep.subr.mxu0 0.0
    %81 = vmatpush1.msra.mxu0 0.0
    %82 = vmatprep.subr.mxu0 0.0
    %83 = vmatpush1.msra.mxu0 0.0
    %84 = vmatprep.subr.mxu0 0.0
    %85 = vmatpush1.msra.mxu0 0.0
    %86 = vmatprep.subr.mxu0 0.0
    %87 = vmatpush1.msra.mxu0 0.0
    %88 = vmatprep.subr.mxu0 0.0
    %89 = vmatpush1.msra.mxu0 0.0
    %90 = vmatprep.subr.mxu0 0.0
    %91 = vmatpush1.msra.mxu0 0.0
    %92 = vmatprep.subr.mxu0 0.0
    %93 = vmatpush1.msra.mxu0 0.0
    %94 = vmatprep.subr.mxu0 0.0
    %95 = vmatpush1.msra.mxu0 0.0
    %96 = vmatprep.subr.mxu0 0.0
    %97 = vmatpush1.msra.mxu0 0.0
    %98 = vmatprep.subr.mxu0 0.0
    %99 = vmatpush1.msra.mxu0 0.0
    %100 = vmatprep.subr.mxu0 0.0
    %101 = vmatpush1.msra.mxu0 0.0
    %102 = vmatprep.subr.mxu0 0.0
    %103 = vmatpush1.msra.mxu0 0.0
    %104 = vmatprep.subr.mxu0 0.0
    %105 = vmatpush1.msra.mxu0 0.0
    %106 = vmatprep.subr.mxu0 0.0
    %107 = vmatpush1.msra.mxu0 0.0
    %108 = vmatprep.subr.mxu0 0.0
    %109 = vmatpush1.msra.mxu0 0.0
    %110 = vmatprep.subr.mxu0 0.0
    %111 = vmatpush1.msra.mxu0 0.0
    %112 = vmatprep.subr.mxu0 0.0
    %113 = vmatpush1.msra.mxu0 0.0
    %114 = vmatprep.subr.mxu0 0.0
    %115 = vmatpush1.msra.mxu0 0.0
    %116 = vmatprep.subr.mxu0 0.0
    %117 = vmatpush1.msra.mxu0 0.0
    %118 = vmatprep.subr.mxu0 0.0
    %119 = vmatpush1.msra.mxu0 0.0
    %120 = vmatprep.subr.mxu0 0.0
    %121 = vmatpush1.msra.mxu0 0.0
    %122 = vmatprep.subr.mxu0 0.0
    %123 = vmatpush1.msra.mxu0 0.0
    %124 = vmatprep.subr.mxu0 0.0
    %125 = vmatpush1.msra.mxu0 0.0
    %126 = vmatprep.subr.mxu0 0.0
    %127 = vmatpush1.msra.mxu0 0.0
    %128 = vmatprep.subr.mxu0 0.0
    %129 = vmatpush1.msra.mxu0 0.0
    %130 = vmatprep.subr.mxu0 0.0
    %131 = vmatpush1.msra.mxu0 0.0
    %132 = vmatprep.subr.mxu0 0.0
    %133 = vmatpush1.msra.mxu0 0.0
    %134 = vmatprep.subr.mxu0 0.0
    %135 = vmatpush1.msra.mxu0 0.0
    %136 = vmatprep.mubr.f32.mxu0 0.0
    %137 = vmatmul.mubr.f32.gmra.mrb[0].mxu0 %v67
    %v138 = vpop.f32.mrb[0].mxu0
    %v139 = vadd.f32 %v58, %v138
    %v140 = vpop.f32.mrb[0].mxu0
    %v141 = vadd.f32 %v62, %v140
    %142 = vmatprep.mubr.f32.mxu0 0.0
    %143 = vmatmul.mubr.f32.gmra.mrb[0].mxu0 %v70
    %v144 = vpop.f32.mrb[0].mxu0
    %v145 = vadd.f32 %v58, %v144
    %v146 = vpop.f32.mrb[0].mxu0
    %v147 = vadd.f32 %v62, %v146
    %148 = vdwg.mxu0
    %149 = vst [vmem:[#allocation7] sm:$0xff] %v139
    %150 = vst [vmem:[#allocation7 + $0x8] sm:$0xff] %v141
    %151 = vst [vmem:[#allocation7 + $0x10] sm:$0xff] %v145
    %152 = vst [vmem:[#allocation7 + $0x18] sm:$0xff] %v147
    // Predicated region
    $region22: #{_pca_unproj_pallas.1} parent=1 // pred_check
      _
    $region23: #{_pca_unproj_pallas.1} parent=1 // pred_check_branch
      %154 = sbr.rel (0) target = $region25
    $region24: #{_pca_unproj_pallas.1} parent=1 // pred_region
      %s156 = ssub.s32 512, 512
      %157 = vsyncadd [#allocation4], %s156
      %s158 = sshll.u32 [#allocation7], 4
      %s159 = int_to_ptr.vmem [resolvable:$true] %s158
      %164 = dma.vmem_to_hbm [thread:$0]  %s159, 512, %s3, [#allocation4], 256, 256, 16
    $region25: #{_pca_unproj_pallas.1} parent=1 // pred_fallthru
      _
    // Predicated region
    $region26: #{_pca_unproj_pallas.1} parent=1 // pred_check
      _
    $region27: #{_pca_unproj_pallas.1} parent=1 // pred_check_branch
      %166 = sbr.rel (0) target = $region29
    $region28: #{_pca_unproj_pallas.1} parent=1 // pred_region
      %167 = dma.done [#allocation4], 512
    $region29: #{_pca_unproj_pallas.1} parent=1 // pred_fallthru
      _
    %168 = vsyncpa [#allocation3], 1
    %169 = vsyncpa [#allocation6], 1
    %170 = vsyncpa [#allocation4], 1

</llo_original>
